<compile_context>
chip_gen: v6e
topology: v6e:2x2x1
jax: 0.10.0
libtpu: 0.0.40
codegen_flags: <defaults>
</compile_context>

<pallas_src>
import jax
import jax.numpy as jnp
from jax.experimental import pallas as pl
from jax.experimental.pallas import tpu as pltpu


def onehot_gather_kernel(rows_ref, seq_ref, out_ref, sem):
    # rows_ref: (B, P) int32 in SMEM (scalar prefetch) -- flat row ids b*S + pos
    # seq_ref : (B*S, H) in HBM (memory_space=pl.ANY), DMA source only
    # out_ref : (1, P, H) VMEM output block for batch b
    # sem     : (INFLIGHT,) DMA completion semaphores
    b = pl.program_id(0)
    P = out_ref.shape[1]
    inflight = sem.shape[0]

    def row_copy(p, slot):
        return pltpu.make_async_copy(
            seq_ref.at[pl.ds(rows_ref[b, p], 1), :],   # (1, H) row in HBM
            out_ref.at[0, pl.ds(p, 1), :],             # (1, H) row of the output block
            sem.at[slot],
        )

    # Prime the pipeline: put up to `inflight` row-gather DMAs in flight.
    for p in range(min(inflight, P)):                  # static unroll
        row_copy(p, p).start()

    # Rolling window: wait for row p, then immediately reuse its slot for row
    # p + inflight, keeping `inflight` DMAs outstanding at all times.
    @pl.loop(0, P)
    def _(p):
        slot = p % inflight
        row_copy(p, slot).wait()

        @pl.when(p + inflight < P)
        def _():
            row_copy(p + inflight, slot).start()


def onehot_gather(sequence, positions):
    """sequence: [B, S, H] float, positions: [B, P] int -> [B, P, H] float."""
    B, S, H = sequence.shape
    _, P = positions.shape
    itemsize = jnp.dtype(sequence.dtype).itemsize

    # Flatten (B, S, H) -> (B*S, H): each gathered row then needs only one
    # dynamic leading-dim offset in the kernel.
    seq_flat = sequence.reshape(B * S, H)

    # Clamp so an invalid position can never drive an out-of-bounds DMA.
    # (F.one_hot in the reference module rejects invalid indices, so valid
    # indices are assumed; the clamp only changes otherwise-undefined input —
    # the old one-hot matmul would instead have produced an all-zero row.)
    pos = jnp.clip(positions.astype(jnp.int32), 0, S - 1)
    rows = pos + (jnp.arange(B, dtype=jnp.int32) * S)[:, None]       # (B, P)

    inflight = max(1, min(8, P))

    return pl.pallas_call(
        onehot_gather_kernel,
        out_shape=jax.ShapeDtypeStruct((B, P, H), sequence.dtype),
        grid_spec=pltpu.PrefetchScalarGridSpec(
            num_scalar_prefetch=1,                       # rows -> SMEM
            grid=(B,),
            in_specs=[pl.BlockSpec(memory_space=pl.ANY)],    # sequence stays in HBM
            out_specs=pl.BlockSpec((1, P, H), lambda b, rows: (b, 0, 0)),
            scratch_shapes=[pltpu.SemaphoreType.DMA((inflight,))],
        ),
        compiler_params=pltpu.CompilerParams(
            dimension_semantics=("parallel",),           # shard batch across TCs (v7x)
        ),
        cost_estimate=pl.CostEstimate(
            flops=0,
            transcendentals=0,
            bytes_accessed=2 * B * P * H * itemsize + B * P * 4,
        ),
    )(rows, seq_flat)


if __name__ == "__main__":
    # The module has no parameters (only an `_is_half` dtype flag: the gather
    # preserves the input dtype exactly), so only example inputs are needed.
    B, S, H, P = 2, 32, 128, 12   # P > inflight so the rolling DMA window is exercised

    key = jax.random.PRNGKey(0)
    k_seq, k_pos = jax.random.split(key)
    sequence = jax.random.normal(k_seq, (B, S, H), dtype=jnp.float32)
    positions = jax.random.randint(k_pos, (B, P), 0, S, dtype=jnp.int32)

    out = onehot_gather(sequence, positions)
    out = jax.block_until_ready(out)

    # Reference: one_hot(positions) @ sequence == direct row gather (bit-exact).
    ref = jnp.take_along_axis(sequence, positions[:, :, None], axis=1)
    assert out.shape == (B, P, H), out.shape
    assert jnp.allclose(out, ref), "mismatch vs reference gather"

    print("KERNEL_OK")
</pallas_src>

<mosaic_0001>
module attributes {stable_mosaic.version = 11 : i64} {
  func.func @onehot_gather_kernel(%arg0: i32, %arg1: memref<2x12xi32, #tpu.memory_space<smem>>, %arg2: memref<64x128xf32, #tpu.memory_space<any>>, %arg3: memref<1x12x128xf32, #tpu.memory_space<vmem>>, %arg4: memref<8x!tpu.dma_semaphore, #tpu.memory_space<semaphore_mem>>) attributes {dimension_semantics = [#tpu.dimension_semantics<parallel>], iteration_bounds = array<i64: 2>, scalar_prefetch = 1 : i64, scratch_operands = 1 : i64, tpu.core_type = #tpu.core_type<tc>, window_params = [{}, {transform_indices = @transform_1, window_bounds = array<i64: 1, 12, 128>}]} {
    %0 = arith.index_cast %arg0 : i32 to index
    %c0 = arith.constant 0 : index
    %1 = memref.load %arg1[%0, %c0] : memref<2x12xi32, #tpu.memory_space<smem>>
    %c0_i32 = arith.constant 0 : i32
    %c0_i32_0 = arith.constant 0 : i32
    %c0_i32_1 = arith.constant 0 : i32
    %2 = tpu.memref_slice %arg2[%1, %c0_i32_1] : memref<64x128xf32, #tpu.memory_space<any>> -> memref<1x128xf32, #tpu.memory_space<any>>
    %c0_i32_2 = arith.constant 0 : i32
    %c0_i32_3 = arith.constant 0 : i32
    %3 = tpu.memref_slice %arg3[%c0_i32, %c0_i32_2, %c0_i32_3] : memref<1x12x128xf32, #tpu.memory_space<vmem>> -> memref<1x1x128xf32, #tpu.memory_space<vmem>>
    %4 = tpu.memref_squeeze %3 : memref<1x1x128xf32, #tpu.memory_space<vmem>> -> memref<1x128xf32, #tpu.memory_space<vmem>>
    %5 = tpu.memref_slice %arg4[%c0_i32_0] : memref<8x!tpu.dma_semaphore, #tpu.memory_space<semaphore_mem>> -> memref<1x!tpu.dma_semaphore, #tpu.memory_space<semaphore_mem>>
    %6 = tpu.memref_squeeze %5 : memref<1x!tpu.dma_semaphore, #tpu.memory_space<semaphore_mem>> -> memref<!tpu.dma_semaphore, #tpu.memory_space<semaphore_mem>>
    tpu.enqueue_dma source(%2 : memref<1x128xf32, #tpu.memory_space<any>>) target(%4 : memref<1x128xf32, #tpu.memory_space<vmem>>) target_semaphore(%6 : memref<!tpu.dma_semaphore, #tpu.memory_space<semaphore_mem>>)
    %7 = arith.index_cast %arg0 : i32 to index
    %c1 = arith.constant 1 : index
    %8 = memref.load %arg1[%7, %c1] : memref<2x12xi32, #tpu.memory_space<smem>>
    %c0_i32_4 = arith.constant 0 : i32
    %c1_i32 = arith.constant 1 : i32
    %c0_i32_5 = arith.constant 0 : i32
    %9 = tpu.memref_slice %arg2[%8, %c0_i32_5] : memref<64x128xf32, #tpu.memory_space<any>> -> memref<1x128xf32, #tpu.memory_space<any>>
    %c1_i32_6 = arith.constant 1 : i32
    %c0_i32_7 = arith.constant 0 : i32
    %10 = tpu.memref_slice %arg3[%c0_i32_4, %c1_i32_6, %c0_i32_7] : memref<1x12x128xf32, #tpu.memory_space<vmem>> -> memref<1x1x128xf32, #tpu.memory_space<vmem>>
    %11 = tpu.memref_squeeze %10 : memref<1x1x128xf32, #tpu.memory_space<vmem>> -> memref<1x128xf32, #tpu.memory_space<vmem>>
    %12 = tpu.memref_slice %arg4[%c1_i32] : memref<8x!tpu.dma_semaphore, #tpu.memory_space<semaphore_mem>> -> memref<1x!tpu.dma_semaphore, #tpu.memory_space<semaphore_mem>>
    %13 = tpu.memref_squeeze %12 : memref<1x!tpu.dma_semaphore, #tpu.memory_space<semaphore_mem>> -> memref<!tpu.dma_semaphore, #tpu.memory_space<semaphore_mem>>
    tpu.enqueue_dma source(%9 : memref<1x128xf32, #tpu.memory_space<any>>) target(%11 : memref<1x128xf32, #tpu.memory_space<vmem>>) target_semaphore(%13 : memref<!tpu.dma_semaphore, #tpu.memory_space<semaphore_mem>>)
    %14 = arith.index_cast %arg0 : i32 to index
    %c2 = arith.constant 2 : index
    %15 = memref.load %arg1[%14, %c2] : memref<2x12xi32, #tpu.memory_space<smem>>
    %c0_i32_8 = arith.constant 0 : i32
    %c2_i32 = arith.constant 2 : i32
    %c0_i32_9 = arith.constant 0 : i32
    %16 = tpu.memref_slice %arg2[%15, %c0_i32_9] : memref<64x128xf32, #tpu.memory_space<any>> -> memref<1x128xf32, #tpu.memory_space<any>>
    %c2_i32_10 = arith.constant 2 : i32
    %c0_i32_11 = arith.constant 0 : i32
    %17 = tpu.memref_slice %arg3[%c0_i32_8, %c2_i32_10, %c0_i32_11] : memref<1x12x128xf32, #tpu.memory_space<vmem>> -> memref<1x1x128xf32, #tpu.memory_space<vmem>>
    %18 = tpu.memref_squeeze %17 : memref<1x1x128xf32, #tpu.memory_space<vmem>> -> memref<1x128xf32, #tpu.memory_space<vmem>>
    %19 = tpu.memref_slice %arg4[%c2_i32] : memref<8x!tpu.dma_semaphore, #tpu.memory_space<semaphore_mem>> -> memref<1x!tpu.dma_semaphore, #tpu.memory_space<semaphore_mem>>
    %20 = tpu.memref_squeeze %19 : memref<1x!tpu.dma_semaphore, #tpu.memory_space<semaphore_mem>> -> memref<!tpu.dma_semaphore, #tpu.memory_space<semaphore_mem>>
    tpu.enqueue_dma source(%16 : memref<1x128xf32, #tpu.memory_space<any>>) target(%18 : memref<1x128xf32, #tpu.memory_space<vmem>>) target_semaphore(%20 : memref<!tpu.dma_semaphore, #tpu.memory_space<semaphore_mem>>)
    %21 = arith.index_cast %arg0 : i32 to index
    %c3 = arith.constant 3 : index
    %22 = memref.load %arg1[%21, %c3] : memref<2x12xi32, #tpu.memory_space<smem>>
    %c0_i32_12 = arith.constant 0 : i32
    %c3_i32 = arith.constant 3 : i32
    %c0_i32_13 = arith.constant 0 : i32
    %23 = tpu.memref_slice %arg2[%22, %c0_i32_13] : memref<64x128xf32, #tpu.memory_space<any>> -> memref<1x128xf32, #tpu.memory_space<any>>
    %c3_i32_14 = arith.constant 3 : i32
    %c0_i32_15 = arith.constant 0 : i32
    %24 = tpu.memref_slice %arg3[%c0_i32_12, %c3_i32_14, %c0_i32_15] : memref<1x12x128xf32, #tpu.memory_space<vmem>> -> memref<1x1x128xf32, #tpu.memory_space<vmem>>
    %25 = tpu.memref_squeeze %24 : memref<1x1x128xf32, #tpu.memory_space<vmem>> -> memref<1x128xf32, #tpu.memory_space<vmem>>
    %26 = tpu.memref_slice %arg4[%c3_i32] : memref<8x!tpu.dma_semaphore, #tpu.memory_space<semaphore_mem>> -> memref<1x!tpu.dma_semaphore, #tpu.memory_space<semaphore_mem>>
    %27 = tpu.memref_squeeze %26 : memref<1x!tpu.dma_semaphore, #tpu.memory_space<semaphore_mem>> -> memref<!tpu.dma_semaphore, #tpu.memory_space<semaphore_mem>>
    tpu.enqueue_dma source(%23 : memref<1x128xf32, #tpu.memory_space<any>>) target(%25 : memref<1x128xf32, #tpu.memory_space<vmem>>) target_semaphore(%27 : memref<!tpu.dma_semaphore, #tpu.memory_space<semaphore_mem>>)
    %28 = arith.index_cast %arg0 : i32 to index
    %c4 = arith.constant 4 : index
    %29 = memref.load %arg1[%28, %c4] : memref<2x12xi32, #tpu.memory_space<smem>>
    %c0_i32_16 = arith.constant 0 : i32
    %c4_i32 = arith.constant 4 : i32
    %c0_i32_17 = arith.constant 0 : i32
    %30 = tpu.memref_slice %arg2[%29, %c0_i32_17] : memref<64x128xf32, #tpu.memory_space<any>> -> memref<1x128xf32, #tpu.memory_space<any>>
    %c4_i32_18 = arith.constant 4 : i32
    %c0_i32_19 = arith.constant 0 : i32
    %31 = tpu.memref_slice %arg3[%c0_i32_16, %c4_i32_18, %c0_i32_19] : memref<1x12x128xf32, #tpu.memory_space<vmem>> -> memref<1x1x128xf32, #tpu.memory_space<vmem>>
    %32 = tpu.memref_squeeze %31 : memref<1x1x128xf32, #tpu.memory_space<vmem>> -> memref<1x128xf32, #tpu.memory_space<vmem>>
    %33 = tpu.memref_slice %arg4[%c4_i32] : memref<8x!tpu.dma_semaphore, #tpu.memory_space<semaphore_mem>> -> memref<1x!tpu.dma_semaphore, #tpu.memory_space<semaphore_mem>>
    %34 = tpu.memref_squeeze %33 : memref<1x!tpu.dma_semaphore, #tpu.memory_space<semaphore_mem>> -> memref<!tpu.dma_semaphore, #tpu.memory_space<semaphore_mem>>
    tpu.enqueue_dma source(%30 : memref<1x128xf32, #tpu.memory_space<any>>) target(%32 : memref<1x128xf32, #tpu.memory_space<vmem>>) target_semaphore(%34 : memref<!tpu.dma_semaphore, #tpu.memory_space<semaphore_mem>>)
    %35 = arith.index_cast %arg0 : i32 to index
    %c5 = arith.constant 5 : index
    %36 = memref.load %arg1[%35, %c5] : memref<2x12xi32, #tpu.memory_space<smem>>
    %c0_i32_20 = arith.constant 0 : i32
    %c5_i32 = arith.constant 5 : i32
    %c0_i32_21 = arith.constant 0 : i32
    %37 = tpu.memref_slice %arg2[%36, %c0_i32_21] : memref<64x128xf32, #tpu.memory_space<any>> -> memref<1x128xf32, #tpu.memory_space<any>>
    %c5_i32_22 = arith.constant 5 : i32
    %c0_i32_23 = arith.constant 0 : i32
    %38 = tpu.memref_slice %arg3[%c0_i32_20, %c5_i32_22, %c0_i32_23] : memref<1x12x128xf32, #tpu.memory_space<vmem>> -> memref<1x1x128xf32, #tpu.memory_space<vmem>>
    %39 = tpu.memref_squeeze %38 : memref<1x1x128xf32, #tpu.memory_space<vmem>> -> memref<1x128xf32, #tpu.memory_space<vmem>>
    %40 = tpu.memref_slice %arg4[%c5_i32] : memref<8x!tpu.dma_semaphore, #tpu.memory_space<semaphore_mem>> -> memref<1x!tpu.dma_semaphore, #tpu.memory_space<semaphore_mem>>
    %41 = tpu.memref_squeeze %40 : memref<1x!tpu.dma_semaphore, #tpu.memory_space<semaphore_mem>> -> memref<!tpu.dma_semaphore, #tpu.memory_space<semaphore_mem>>
    tpu.enqueue_dma source(%37 : memref<1x128xf32, #tpu.memory_space<any>>) target(%39 : memref<1x128xf32, #tpu.memory_space<vmem>>) target_semaphore(%41 : memref<!tpu.dma_semaphore, #tpu.memory_space<semaphore_mem>>)
    %42 = arith.index_cast %arg0 : i32 to index
    %c6 = arith.constant 6 : index
    %43 = memref.load %arg1[%42, %c6] : memref<2x12xi32, #tpu.memory_space<smem>>
    %c0_i32_24 = arith.constant 0 : i32
    %c6_i32 = arith.constant 6 : i32
    %c0_i32_25 = arith.constant 0 : i32
    %44 = tpu.memref_slice %arg2[%43, %c0_i32_25] : memref<64x128xf32, #tpu.memory_space<any>> -> memref<1x128xf32, #tpu.memory_space<any>>
    %c6_i32_26 = arith.constant 6 : i32
    %c0_i32_27 = arith.constant 0 : i32
    %45 = tpu.memref_slice %arg3[%c0_i32_24, %c6_i32_26, %c0_i32_27] : memref<1x12x128xf32, #tpu.memory_space<vmem>> -> memref<1x1x128xf32, #tpu.memory_space<vmem>>
    %46 = tpu.memref_squeeze %45 : memref<1x1x128xf32, #tpu.memory_space<vmem>> -> memref<1x128xf32, #tpu.memory_space<vmem>>
    %47 = tpu.memref_slice %arg4[%c6_i32] : memref<8x!tpu.dma_semaphore, #tpu.memory_space<semaphore_mem>> -> memref<1x!tpu.dma_semaphore, #tpu.memory_space<semaphore_mem>>
    %48 = tpu.memref_squeeze %47 : memref<1x!tpu.dma_semaphore, #tpu.memory_space<semaphore_mem>> -> memref<!tpu.dma_semaphore, #tpu.memory_space<semaphore_mem>>
    tpu.enqueue_dma source(%44 : memref<1x128xf32, #tpu.memory_space<any>>) target(%46 : memref<1x128xf32, #tpu.memory_space<vmem>>) target_semaphore(%48 : memref<!tpu.dma_semaphore, #tpu.memory_space<semaphore_mem>>)
    %49 = arith.index_cast %arg0 : i32 to index
    %c7 = arith.constant 7 : index
    %50 = memref.load %arg1[%49, %c7] : memref<2x12xi32, #tpu.memory_space<smem>>
    %c0_i32_28 = arith.constant 0 : i32
    %c7_i32 = arith.constant 7 : i32
    %c0_i32_29 = arith.constant 0 : i32
    %51 = tpu.memref_slice %arg2[%50, %c0_i32_29] : memref<64x128xf32, #tpu.memory_space<any>> -> memref<1x128xf32, #tpu.memory_space<any>>
    %c7_i32_30 = arith.constant 7 : i32
    %c0_i32_31 = arith.constant 0 : i32
    %52 = tpu.memref_slice %arg3[%c0_i32_28, %c7_i32_30, %c0_i32_31] : memref<1x12x128xf32, #tpu.memory_space<vmem>> -> memref<1x1x128xf32, #tpu.memory_space<vmem>>
    %53 = tpu.memref_squeeze %52 : memref<1x1x128xf32, #tpu.memory_space<vmem>> -> memref<1x128xf32, #tpu.memory_space<vmem>>
    %54 = tpu.memref_slice %arg4[%c7_i32] : memref<8x!tpu.dma_semaphore, #tpu.memory_space<semaphore_mem>> -> memref<1x!tpu.dma_semaphore, #tpu.memory_space<semaphore_mem>>
    %55 = tpu.memref_squeeze %54 : memref<1x!tpu.dma_semaphore, #tpu.memory_space<semaphore_mem>> -> memref<!tpu.dma_semaphore, #tpu.memory_space<semaphore_mem>>
    tpu.enqueue_dma source(%51 : memref<1x128xf32, #tpu.memory_space<any>>) target(%53 : memref<1x128xf32, #tpu.memory_space<vmem>>) target_semaphore(%55 : memref<!tpu.dma_semaphore, #tpu.memory_space<semaphore_mem>>)
    %c0_i32_32 = arith.constant 0 : i32
    %c12_i32 = arith.constant 12 : i32
    %56 = arith.addi %c0_i32_32, %c12_i32 : i32
    %c1_i32_33 = arith.constant 1 : i32
    scf.for %arg5 = %c0_i32_32 to %56 step %c1_i32_33  : i32 {
      %c1_i32_35 = arith.constant 1 : i32
      %57 = arith.muli %arg5, %c1_i32_35 : i32
      %c0_i32_36 = arith.constant 0 : i32
      %58 = arith.addi %c0_i32_36, %57 : i32
      %c8_i32 = arith.constant 8 : i32
      %c0_i32_37 = arith.constant 0 : i32
      %59 = arith.cmpi eq, %c8_i32, %c0_i32_37 : i32
      %c1_i32_38 = arith.constant 1 : i32
      %60 = arith.select %59, %c1_i32_38, %c8_i32 : i32
      %61 = arith.remsi %58, %60 : i32
      %c0_i32_39 = arith.constant 0 : i32
      %62 = arith.cmpi ne, %61, %c0_i32_39 : i32
      %c0_i32_40 = arith.constant 0 : i32
      %63 = arith.cmpi slt, %61, %c0_i32_40 : i32
      %c0_i32_41 = arith.constant 0 : i32
      %64 = arith.cmpi slt, %60, %c0_i32_41 : i32
      %65 = arith.xori %63, %64 : i1
      %66 = arith.andi %65, %62 : i1
      %67 = arith.addi %61, %60 : i32
      %68 = arith.select %66, %67, %61 : i32
      %69 = arith.index_cast %arg0 : i32 to index
      %70 = arith.index_cast %58 : i32 to index
      %71 = memref.load %arg1[%69, %70] : memref<2x12xi32, #tpu.memory_space<smem>>
      %c0_i32_42 = arith.constant 0 : i32
      %c0_i32_43 = arith.constant 0 : i32
      %72 = tpu.memref_slice %arg2[%71, %c0_i32_43] : memref<64x128xf32, #tpu.memory_space<any>> -> memref<1x128xf32, #tpu.memory_space<any>>
      %c0_i32_44 = arith.constant 0 : i32
      %73 = tpu.memref_slice %arg3[%c0_i32_42, %58, %c0_i32_44] : memref<1x12x128xf32, #tpu.memory_space<vmem>> -> memref<1x1x128xf32, #tpu.memory_space<vmem>>
      %74 = tpu.memref_squeeze %73 : memref<1x1x128xf32, #tpu.memory_space<vmem>> -> memref<1x128xf32, #tpu.memory_space<vmem>>
      %75 = tpu.memref_slice %arg4[%68] : memref<8x!tpu.dma_semaphore, #tpu.memory_space<semaphore_mem>> -> memref<1x!tpu.dma_semaphore, #tpu.memory_space<semaphore_mem>>
      %76 = tpu.memref_squeeze %75 : memref<1x!tpu.dma_semaphore, #tpu.memory_space<semaphore_mem>> -> memref<!tpu.dma_semaphore, #tpu.memory_space<semaphore_mem>>
      tpu.wait_dma2 semaphore(%76 : memref<!tpu.dma_semaphore, #tpu.memory_space<semaphore_mem>>) src(%72 : memref<1x128xf32, #tpu.memory_space<any>>) dst(%74 : memref<1x128xf32, #tpu.memory_space<vmem>>)
      %c8_i32_45 = arith.constant 8 : i32
      %77 = arith.addi %58, %c8_i32_45 : i32
      %c12_i32_46 = arith.constant 12 : i32
      %78 = arith.cmpi slt, %77, %c12_i32_46 : i32
      %79 = arith.extui %78 : i1 to i32
      %c0_i32_47 = arith.constant 0 : i32
      %80 = arith.cmpi ne, %79, %c0_i32_47 : i32
      scf.if %80 {
        %c8_i32_48 = arith.constant 8 : i32
        %81 = arith.addi %58, %c8_i32_48 : i32
        %82 = arith.index_cast %arg0 : i32 to index
        %83 = arith.index_cast %81 : i32 to index
        %84 = memref.load %arg1[%82, %83] : memref<2x12xi32, #tpu.memory_space<smem>>
        %c0_i32_49 = arith.constant 0 : i32
        %c0_i32_50 = arith.constant 0 : i32
        %85 = tpu.memref_slice %arg2[%84, %c0_i32_50] : memref<64x128xf32, #tpu.memory_space<any>> -> memref<1x128xf32, #tpu.memory_space<any>>
        %c0_i32_51 = arith.constant 0 : i32
        %86 = tpu.memref_slice %arg3[%c0_i32_49, %81, %c0_i32_51] : memref<1x12x128xf32, #tpu.memory_space<vmem>> -> memref<1x1x128xf32, #tpu.memory_space<vmem>>
        %87 = tpu.memref_squeeze %86 : memref<1x1x128xf32, #tpu.memory_space<vmem>> -> memref<1x128xf32, #tpu.memory_space<vmem>>
        %88 = tpu.memref_slice %arg4[%68] : memref<8x!tpu.dma_semaphore, #tpu.memory_space<semaphore_mem>> -> memref<1x!tpu.dma_semaphore, #tpu.memory_space<semaphore_mem>>
        %89 = tpu.memref_squeeze %88 : memref<1x!tpu.dma_semaphore, #tpu.memory_space<semaphore_mem>> -> memref<!tpu.dma_semaphore, #tpu.memory_space<semaphore_mem>>
        tpu.enqueue_dma source(%85 : memref<1x128xf32, #tpu.memory_space<any>>) target(%87 : memref<1x128xf32, #tpu.memory_space<vmem>>) target_semaphore(%89 : memref<!tpu.dma_semaphore, #tpu.memory_space<semaphore_mem>>)
      } else {
      }
    }
    %c12_i32_34 = arith.constant 12 : i32
    return
  }
  func.func @transform_1(%arg0: i32, %arg1: memref<2x12xi32, #tpu.memory_space<smem>>) -> (i32, i32, i32) {
    %c0_i32 = arith.constant 0 : i32
    %c0_i32_0 = arith.constant 0 : i32
    %c0_i32_1 = arith.constant 0 : i32
    return %arg0, %c0_i32, %c0_i32_0 : i32, i32, i32
  }
}

</mosaic_0001>

<llo_original>
// kernel: tpu_custom_call.1
$region0: #{tpu_custom_call.1}
  #allocation0 [shape = 'u32[]', space=smem, size = 0x4, offset = 0x4, fixed_abs, tag = 'smem constant byte address 0x4 - core index']
  #allocation1 [shape = 'u32[144,128]{1,0:T(1,128)}', space=vmem, size = 0x12000, scoped, tag = 'internal scratch']
  #allocation2 [shape = 's32[8]{0}', space=sflag, size = 0x20, scoped, tag = 'scratch operand']
  #allocation3 [shape = 's32[1]{0}', space=sflag, size = 0x4, scoped, tag = 'scoped memory for tpu_custom_call.1']
  #allocation4 [shape = 'u8[1024]{0}', space=smem, size = 0x400, scoped, tag = 'prefetched SMEM operand 0']
  #allocation5 [shape = 's32[]', space=sflag, size = 0x4, offset = 0, fixed_abs, tag = 'sflag constant byte address 0x0 - dummy sync flag']
  #allocation6 [shape = 's32[]', space=sflag, size = 0x4, offset = 0, fixed_abs, tag = 'sflag constant byte address 0x0 - dummy sync flag']
  #allocation7 [shape = 'u32[]', space=smem, size = 0x4, offset = 0x44, fixed_abs, tag = 'smem constant byte address 0x44 - assertion arg 0']
  #allocation8 [shape = 'u32[]', space=smem, size = 0x4, offset = 0x48, fixed_abs, tag = 'smem constant byte address 0x48 - assertion arg 1']
  #allocation9 [shape = 's32[]', space=sflag, size = 0x4, offset = 0, fixed_abs, tag = 'sflag constant byte address 0x0 - dummy sync flag']
  #allocation10 [shape = 's32[]', space=sflag, size = 0x4, offset = 0, fixed_abs, tag = 'sflag constant byte address 0x0 - dummy sync flag']
  #allocation11 [shape = 's32[]', space=sflag, size = 0x4, offset = 0, fixed_abs, tag = 'sflag constant byte address 0x0 - dummy sync flag']
  #allocation12 [shape = 's32[]', space=sflag, size = 0x4, offset = 0, fixed_abs, tag = 'sflag constant byte address 0x0 - dummy sync flag']
  #allocation13 [shape = 's32[]', space=sflag, size = 0x4, offset = 0, fixed_abs, tag = 'sflag constant byte address 0x0 - dummy sync flag']
  #allocation14 [shape = 's32[]', space=sflag, size = 0x4, offset = 0, fixed_abs, tag = 'sflag constant byte address 0x0 - dummy sync flag']
  #allocation15 [shape = 's32[]', space=sflag, size = 0x4, offset = 0, fixed_abs, tag = 'sflag constant byte address 0x0 - dummy sync flag']
  #allocation16 [shape = 's32[]', space=sflag, size = 0x4, offset = 0, fixed_abs, tag = 'sflag constant byte address 0x0 - dummy sync flag']
  #allocation17 [shape = 's32[]', space=sflag, size = 0x4, offset = 0, fixed_abs, tag = 'sflag constant byte address 0x0 - dummy sync flag']
  #allocation18 [shape = 's32[]', space=sflag, size = 0x4, offset = 0, fixed_abs, tag = 'sflag constant byte address 0x0 - dummy sync flag']
  #allocation19 [shape = 's32[]', space=sflag, size = 0x4, offset = 0, fixed_abs, tag = 'sflag constant byte address 0x0 - dummy sync flag']
  #allocation20 [shape = 's32[]', space=sflag, size = 0x4, offset = 0, fixed_abs, tag = 'sflag constant byte address 0x0 - dummy sync flag']
  #allocation21 [shape = 's32[]', space=sflag, size = 0x4, offset = 0, fixed_abs, tag = 'sflag constant byte address 0x0 - dummy sync flag']
  #allocation22 [shape = 's32[]', space=sflag, size = 0x4, offset = 0, fixed_abs, tag = 'sflag constant byte address 0x0 - dummy sync flag']
  #allocation23 [shape = 's32[]', space=sflag, size = 0x4, offset = 0, fixed_abs, tag = 'sflag constant byte address 0x0 - dummy sync flag']
  #allocation24 [shape = 's32[]', space=sflag, size = 0x4, offset = 0, fixed_abs, tag = 'sflag constant byte address 0x0 - dummy sync flag']
  %s0 = inlined_call_operand.hbm [shape: s32[2,12], index: 0, kind: input, shape index: {}]
  %s1 = inlined_call_operand.hbm [shape: f32[64,128], index: 1, kind: input, shape index: {}]
  %s2 = inlined_call_operand.vmem [shape: f32[2,12,128], index: 2, kind: output, shape index: {}]
  %s3 = sld [smem:[#allocation0]]
  $region72: #{tpu_custom_call.1} parent=0
    _
  %s5 = ssub.s32 1, %s3
  %s6 = scalar_select 0, %s5, %s3
  %8 = dma.hbm_to_smem %s0, 32, [#allocation4], [#allocation3]
  %9 = dma.done [#allocation3], 32
  %10 = sfence
  loop: start=0, step=1, limit=3
  $region2: #{tpu_custom_call.1} parent=0 // loop_pre_header
    _
  $region3: #{tpu_custom_call.1} parent=0 // loop_header
    %s12 = sphi 0, %s16
    %p13 = scmp.ge.s32.totalorder %s12, 3
    %s21 = sphi 0, %s23
    %s24 = sphi 0, %s21
    %s34 = sphi 0, %s24
  $region4: #{tpu_custom_call.1} parent=0 // loop_header_branch
    %15 = sbr.rel (%p13) target = $region8
  $region5: #{tpu_custom_call.1} parent=0 // loop_body
    %s17 = ssub.s32 %s12, 1
    %s18 = sadd.s32 %s12, 1
    %s19 = ssub.s32 %s12, %s18
    %p20 = scmp.eq.s32.totalorder %s19, 0
    %s22 = sadd.s32 %s21, 1
    %s23 = scalar_select %p20, %s21, %s22
    %p25 = pneg %p20
    %p26 = scmp.eq.s32.totalorder %s12, 1
    %p27 = por %p25, %p26
    %p28 = scmp.ne.s32.totalorder %s21, %s24
    %p29 = scmp.eq.s32.totalorder %s12, 0
    %p30 = por %p28, %p29
    %p31 = scmp.ne.s32.totalorder %s21, %s24
    %p32 = scmp.eq.s32.totalorder %s17, 1
    %p33 = por %p31, %p32
    %p35 = scmp.ne.s32.totalorder %s24, %s34
    %p36 = scmp.eq.s32.totalorder %s17, 0
    %p37 = por %p35, %p36
    %p38 = scmp.lt.s32.totalorder %s12, 2
    // Predicated region
    $region9: #{tpu_custom_call.1} parent=5 // pred_check
      %p39 = pneg %p38
    $region10: #{tpu_custom_call.1} parent=5 // pred_check_branch
      %41 = sbr.rel (%p39) target = $region12
    $region11: #{tpu_custom_call.1} parent=5 // pred_region
      %p42 = pneg %p30
      %p43 = pneg %p27
      %p44 = scmp.lt.s32.totalorder %s12, 1
      %s45 = scalar_select %p44, %s12, 1
      %s46 = smul.addr %s45, 2
      %s47 = smul.addr %s46, 8
      %s48 = scalar_lea.vmem %s2, %s47
      %p49 = scmp.lt.s32.totalorder %s12, 1
      %s50 = scalar_select %p49, %s12, 1
      %s51 = smul.addr %s50, 2
      %s52 = smul.addr %s51, 8
      %s53 = scalar_lea.vmem %s2, %s52
      %s54 = smul.u32 %s12, 128
      %s55 = sld [smem:[#allocation4 + %s54]]
      %s56 = smul.addr %s55, 16
      %s57 = scalar_lea.hbm %s1, %s56
      // Predicated region
      $region13: #{tpu_custom_call.1} parent=11 // pred_check
        _
      $region14: #{tpu_custom_call.1} parent=11 // pred_check_branch
        %59 = sbr.rel target = $region16
      $region15: #{tpu_custom_call.1} parent=11 // pred_region
        %60 = sst [smem:[#allocation7]] [#allocation6]
        %61 = sst [smem:[#allocation8]] [#allocation5]
      $region16: #{tpu_custom_call.1} parent=11 // pred_fallthru
        _
      %63 = shalt.err (0)
      %s65 = sshll.u32 %s53, 4
      %s66 = int_to_ptr.vmem [resolvable:$true] %s65
      %68 = dma.hbm_to_vmem [thread:$0]  %s57, 16, %s66, [#allocation2]
      %s69 = sadd.s32 %s54, 1
      %s70 = sld [smem:[#allocation4 + %s69]]
      %s71 = smul.addr %s70, 16
      %s72 = scalar_lea.hbm %s1, %s71
      %s73 = scalar_lea.vmem %s53, 1
      %s74 = scalar_lea.sflag [#allocation2], 1
      // Predicated region
      $region17: #{tpu_custom_call.1} parent=11 // pred_check
        _
      $region18: #{tpu_custom_call.1} parent=11 // pred_check_branch
        %76 = sbr.rel target = $region20
      $region19: #{tpu_custom_call.1} parent=11 // pred_region
        %77 = sst [smem:[#allocation7]] [#allocation10]
        %78 = sst [smem:[#allocation8]] [#allocation9]
      $region20: #{tpu_custom_call.1} parent=11 // pred_fallthru
        _
      %80 = shalt.err (0)
      %s82 = sshll.u32 %s73, 4
      %s83 = int_to_ptr.vmem [resolvable:$true] %s82
      %85 = dma.hbm_to_vmem [thread:$0]  %s72, 16, %s83, %s74
      %s86 = sadd.s32 %s54, 2
      %s87 = sld [smem:[#allocation4 + %s86]]
      %s88 = smul.addr %s87, 16
      %s89 = scalar_lea.hbm %s1, %s88
      %s90 = scalar_lea.vmem %s53, 2
      %s91 = scalar_lea.sflag [#allocation2], 2
      // Predicated region
      $region21: #{tpu_custom_call.1} parent=11 // pred_check
        _
      $region22: #{tpu_custom_call.1} parent=11 // pred_check_branch
        %93 = sbr.rel target = $region24
      $region23: #{tpu_custom_call.1} parent=11 // pred_region
        %94 = sst [smem:[#allocation7]] [#allocation12]
        %95 = sst [smem:[#allocation8]] [#allocation11]
      $region24: #{tpu_custom_call.1} parent=11 // pred_fallthru
        _
      %97 = shalt.err (0)
      %s99 = sshll.u32 %s90, 4
      %s100 = int_to_ptr.vmem [resolvable:$true] %s99
      %102 = dma.hbm_to_vmem [thread:$0]  %s89, 16, %s100, %s91
      %s103 = sadd.s32 %s54, 3
      %s104 = sld [smem:[#allocation4 + %s103]]
      %s105 = smul.addr %s104, 16
      %s106 = scalar_lea.hbm %s1, %s105
      %s107 = scalar_lea.vmem %s53, 3
      %s108 = scalar_lea.sflag [#allocation2], 3
      // Predicated region
      $region25: #{tpu_custom_call.1} parent=11 // pred_check
        _
      $region26: #{tpu_custom_call.1} parent=11 // pred_check_branch
        %110 = sbr.rel target = $region28
      $region27: #{tpu_custom_call.1} parent=11 // pred_region
        %111 = sst [smem:[#allocation7]] [#allocation14]
        %112 = sst [smem:[#allocation8]] [#allocation13]
      $region28: #{tpu_custom_call.1} parent=11 // pred_fallthru
        _
      %114 = shalt.err (0)
      %s116 = sshll.u32 %s107, 4
      %s117 = int_to_ptr.vmem [resolvable:$true] %s116
      %119 = dma.hbm_to_vmem [thread:$0]  %s106, 16, %s117, %s108
      %s120 = sadd.s32 %s54, 4
      %s121 = sld [smem:[#allocation4 + %s120]]
      %s122 = smul.addr %s121, 16
      %s123 = scalar_lea.hbm %s1, %s122
      %s124 = scalar_lea.vmem %s53, 4
      %s125 = scalar_lea.sflag [#allocation2], 4
      // Predicated region
      $region29: #{tpu_custom_call.1} parent=11 // pred_check
        _
      $region30: #{tpu_custom_call.1} parent=11 // pred_check_branch
        %127 = sbr.rel target = $region32
      $region31: #{tpu_custom_call.1} parent=11 // pred_region
        %128 = sst [smem:[#allocation7]] [#allocation16]
        %129 = sst [smem:[#allocation8]] [#allocation15]
      $region32: #{tpu_custom_call.1} parent=11 // pred_fallthru
        _
      %131 = shalt.err (0)
      %s133 = sshll.u32 %s124, 4
      %s134 = int_to_ptr.vmem [resolvable:$true] %s133
      %136 = dma.hbm_to_vmem [thread:$0]  %s123, 16, %s134, %s125
      %s137 = sadd.s32 %s54, 5
      %s138 = sld [smem:[#allocation4 + %s137]]
      %s139 = smul.addr %s138, 16
      %s140 = scalar_lea.hbm %s1, %s139
      %s141 = scalar_lea.vmem %s53, 5
      %s142 = scalar_lea.sflag [#allocation2], 5
      // Predicated region
      $region33: #{tpu_custom_call.1} parent=11 // pred_check
        _
      $region34: #{tpu_custom_call.1} parent=11 // pred_check_branch
        %144 = sbr.rel target = $region36
      $region35: #{tpu_custom_call.1} parent=11 // pred_region
        %145 = sst [smem:[#allocation7]] [#allocation18]
        %146 = sst [smem:[#allocation8]] [#allocation17]
      $region36: #{tpu_custom_call.1} parent=11 // pred_fallthru
        _
      %148 = shalt.err (0)
      %s150 = sshll.u32 %s141, 4
      %s151 = int_to_ptr.vmem [resolvable:$true] %s150
      %153 = dma.hbm_to_vmem [thread:$0]  %s140, 16, %s151, %s142
      %s154 = sadd.s32 %s54, 6
      %s155 = sld [smem:[#allocation4 + %s154]]
      %s156 = smul.addr %s155, 16
      %s157 = scalar_lea.hbm %s1, %s156
      %s158 = scalar_lea.vmem %s53, 6
      %s159 = scalar_lea.sflag [#allocation2], 6
      // Predicated region
      $region37: #{tpu_custom_call.1} parent=11 // pred_check
        _
      $region38: #{tpu_custom_call.1} parent=11 // pred_check_branch
        %161 = sbr.rel target = $region40
      $region39: #{tpu_custom_call.1} parent=11 // pred_region
        %162 = sst [smem:[#allocation7]] [#allocation20]
        %163 = sst [smem:[#allocation8]] [#allocation19]
      $region40: #{tpu_custom_call.1} parent=11 // pred_fallthru
        _
      %165 = shalt.err (0)
      %s167 = sshll.u32 %s158, 4
      %s168 = int_to_ptr.vmem [resolvable:$true] %s167
      %170 = dma.hbm_to_vmem [thread:$0]  %s157, 16, %s168, %s159
      %s171 = sadd.s32 %s54, 7
      %s172 = sld [smem:[#allocation4 + %s171]]
      %s173 = smul.addr %s172, 16
      %s174 = scalar_lea.hbm %s1, %s173
      %s175 = scalar_lea.vmem %s53, 7
      %s176 = scalar_lea.sflag [#allocation2], 7
      // Predicated region
      $region41: #{tpu_custom_call.1} parent=11 // pred_check
        _
      $region42: #{tpu_custom_call.1} parent=11 // pred_check_branch
        %178 = sbr.rel target = $region44
      $region43: #{tpu_custom_call.1} parent=11 // pred_region
        %179 = sst [smem:[#allocation7]] [#allocation22]
        %180 = sst [smem:[#allocation8]] [#allocation21]
      $region44: #{tpu_custom_call.1} parent=11 // pred_fallthru
        _
      %182 = shalt.err (0)
      %s184 = sshll.u32 %s175, 4
      %s185 = int_to_ptr.vmem [resolvable:$true] %s184
      %187 = dma.hbm_to_vmem [thread:$0]  %s174, 16, %s185, %s176
      loop: start=0, step=1, limit=12
      $region45: #{tpu_custom_call.1} parent=11 // loop_pre_header
        _
      $region46: #{tpu_custom_call.1} parent=11 // loop_header
        %s189 = sphi 0, %s193
        %p190 = scmp.ge.s32.totalorder %s189, 12
      $region47: #{tpu_custom_call.1} parent=11 // loop_header_branch
        %192 = sbr.rel (%p190) target = $region51
      $region48: #{tpu_custom_call.1} parent=11 // loop_body
        %p194 = scmp.lt.s32.totalorder %s189, 0
        %s195 = ssub.s32 0, %s189
        %s196 = scalar_select %p194, %s195, %s189
        %s197 = sand.u32 %s196, 7
        %s198 = ssub.s32 0, %s197
        %s199 = scalar_select %p194, %s198, %s197
        %p200 = scmp.ne.s32.totalorder %s199, 0
        %p201 = scmp.lt.s32.totalorder %s199, 0
        %p202 = pnand %p201, %p200
        %p203 = pneg %p202
        %s204 = sadd.s32 %s199, 8
        %s205 = scalar_select %p203, %s204, %s199
        %s206 = sshra.s32 %s189, 7
        %s207 = sand.u32 %s189, 127
        %s208 = sadd.s32 %s206, %s12
        %s209 = smul.u32 %s208, 128
        %s210 = sshra.s32 %s189, 7
        %s211 = sand.u32 %s189, 127
        %s212 = sadd.s32 %s209, %s211
        %s213 = sld [smem:[#allocation4 + %s212]]
        %s214 = scalar_lea.sflag [#allocation2], %s205
        %s215 = smul.u32 1, 1
        %s216 = sshll.u32 %s215, 4
        %217 = dma.done %s214, %s216
        %s218 = sadd.s32 %s189, 8
        %p219 = scmp.lt.s32.totalorder %s218, 12
        // Predicated region
        $region52: #{tpu_custom_call.1} parent=48 // pred_check
          %p220 = pneg %p219
        $region53: #{tpu_custom_call.1} parent=48 // pred_check_branch
          %222 = sbr.rel (%p220) target = $region55
        $region54: #{tpu_custom_call.1} parent=48 // pred_region
          %s223 = sshra.s32 %s218, 7
          %s224 = sand.u32 %s218, 127
          %s225 = sadd.s32 %s223, %s12
          %s226 = smul.u32 %s225, 128
          %s227 = sshra.s32 %s218, 7
          %s228 = sand.u32 %s218, 127
          %s229 = sadd.s32 %s226, %s228
          %s230 = sld [smem:[#allocation4 + %s229]]
          %s231 = smul.addr %s230, 16
          %s232 = scalar_lea.hbm %s1, %s231
          %s233 = scalar_lea.vmem %s53, %s218
          // Predicated region
          $region56: #{tpu_custom_call.1} parent=54 // pred_check
            _
          $region57: #{tpu_custom_call.1} parent=54 // pred_check_branch
            %235 = sbr.rel target = $region59
          $region58: #{tpu_custom_call.1} parent=54 // pred_region
            %236 = sst [smem:[#allocation7]] [#allocation24]
            %237 = sst [smem:[#allocation8]] [#allocation23]
          $region59: #{tpu_custom_call.1} parent=54 // pred_fallthru
            _
          %239 = shalt.err (0)
          %s241 = sshll.u32 %s233, 4
          %s242 = int_to_ptr.vmem [resolvable:$true] %s241
          %244 = dma.hbm_to_vmem [thread:$0]  %s232, 16, %s242, %s214
        $region55: #{tpu_custom_call.1} parent=48 // pred_fallthru
          _
      $region49: #{tpu_custom_call.1} parent=11 // loop_footer
        %s193 = sadd.s32 1, %s189
      $region50: #{tpu_custom_call.1} parent=11 // loop_footer_branch
        %188 = sbr.rel target = $region46
      $region51: #{tpu_custom_call.1} parent=11 // loop_exit
        _
      %p245 = scmp.lt.s32.totalorder %s12, 1
      %s246 = scalar_select %p245, %s12, 1
      %s247 = smul.addr %s246, 2
      %s248 = smul.addr %s247, 8
      %s249 = scalar_lea.vmem %s2, %s248
      // Predicated region
      $region60: #{tpu_custom_call.1} parent=11 // pred_check
        %p250 = pneg %p27
      $region61: #{tpu_custom_call.1} parent=11 // pred_check_branch
        %252 = sbr.rel (%p250) target = $region63
      $region62: #{tpu_custom_call.1} parent=11 // pred_region
        _
      $region63: #{tpu_custom_call.1} parent=11 // pred_fallthru
        _
    $region12: #{tpu_custom_call.1} parent=5 // pred_fallthru
      _
    %p253 = scmp.le.s32.totalorder 1, %s12
    // Predicated region
    $region64: #{tpu_custom_call.1} parent=5 // pred_check
      %p254 = pneg %p253
    $region65: #{tpu_custom_call.1} parent=5 // pred_check_branch
      %256 = sbr.rel (%p254) target = $region67
    $region66: #{tpu_custom_call.1} parent=5 // pred_region
      %s257 = ssub.s32 %s12, 1
      // Predicated region
      $region68: #{tpu_custom_call.1} parent=66 // pred_check
        %p258 = pneg %p33
      $region69: #{tpu_custom_call.1} parent=66 // pred_check_branch
        %260 = sbr.rel (%p258) target = $region71
      $region70: #{tpu_custom_call.1} parent=66 // pred_region
        %p261 = scmp.lt.s32.totalorder %s17, 1
        %s262 = scalar_select %p261, %s17, 1
        %s263 = smul.addr %s262, 2
        %s264 = smul.addr %s263, 8
        %s265 = scalar_lea.vmem %s2, %s264
      $region71: #{tpu_custom_call.1} parent=66 // pred_fallthru
        _
    $region67: #{tpu_custom_call.1} parent=5 // pred_fallthru
      _
  $region6: #{tpu_custom_call.1} parent=0 // loop_footer
    %s16 = sadd.s32 1, %s12
  $region7: #{tpu_custom_call.1} parent=0 // loop_footer_branch
    %11 = sbr.rel target = $region3
  $region8: #{tpu_custom_call.1} parent=0 // loop_exit
    _
  %266 = vsyncmov [#allocation2]
  %s267 = vpop.sfrf %266
  %p268 = scmp.eq.s32.totalorder %s267, 0
  %p269 = pneg %p268
  %271 = shalt.err (%p269)
  %s272 = scalar_lea.sflag [#allocation2], 1
  %273 = vsyncmov %s272
  %s274 = vpop.sfrf %273
  %p275 = scmp.eq.s32.totalorder %s274, 0
  %p276 = pneg %p275
  %278 = shalt.err (%p276)
  %s279 = scalar_lea.sflag [#allocation2], 2
  %280 = vsyncmov %s279
  %s281 = vpop.sfrf %280
  %p282 = scmp.eq.s32.totalorder %s281, 0
  %p283 = pneg %p282
  %285 = shalt.err (%p283)
  %s286 = scalar_lea.sflag [#allocation2], 3
  %287 = vsyncmov %s286
  %s288 = vpop.sfrf %287
  %p289 = scmp.eq.s32.totalorder %s288, 0
  %p290 = pneg %p289
  %292 = shalt.err (%p290)
  %s293 = scalar_lea.sflag [#allocation2], 4
  %294 = vsyncmov %s293
  %s295 = vpop.sfrf %294
  %p296 = scmp.eq.s32.totalorder %s295, 0
  %p297 = pneg %p296
  %299 = shalt.err (%p297)
  %s300 = scalar_lea.sflag [#allocation2], 5
  %301 = vsyncmov %s300
  %s302 = vpop.sfrf %301
  %p303 = scmp.eq.s32.totalorder %s302, 0
  %p304 = pneg %p303
  %306 = shalt.err (%p304)
  %s307 = scalar_lea.sflag [#allocation2], 6
  %308 = vsyncmov %s307
  %s309 = vpop.sfrf %308
  %p310 = scmp.eq.s32.totalorder %s309, 0
  %p311 = pneg %p310
  %313 = shalt.err (%p311)
  %s314 = scalar_lea.sflag [#allocation2], 7
  %315 = vsyncmov %s314
  %s316 = vpop.sfrf %315
  %p317 = scmp.eq.s32.totalorder %s316, 0
  %p318 = pneg %p317
  %320 = shalt.err (%p318)

</llo_original>
